<compile_context>
chip_gen: v7x
topology: tpu7x:2x2x1
jax: 0.10.0
libtpu: 0.0.40
codegen_flags: <defaults>
</compile_context>

<pallas_src>
import jax
import jax.numpy as jnp
from jax.experimental import pallas as pl
from jax.experimental.pallas import tpu as pltpu


def _make_cbam_kernel(HW, tHW):
    """Build the kernel with static HW / tile-size baked in (for masking + 1/HW scale)."""
    needs_mask = (HW % tHW) != 0
    inv_hw = 1.0 / float(HW)

    def kernel(x_ref, w1t_ref, w2t_ref, o_ref, acc_ref):
        # x_ref:   (TN, C, tHW)  spatial chunk of TN batch elements
        # w1t_ref: (C, hidden)   Conv2d(C, C//r, 1) weight, pre-transposed
        # w2t_ref: (hidden, C)   Conv2d(C//r, C, 1) weight, pre-transposed
        # o_ref:   (TN, C)       sigmoid channel attention for this batch block
        # acc_ref: (TN, C) f32   running spatial sum (VMEM scratch)
        hw = pl.program_id(1)

        @pl.when(hw == 0)
        def _init():
            acc_ref[...] = jnp.zeros_like(acc_ref)

        x = x_ref[...].astype(jnp.float32)  # upcast before accumulation (bf16-safe)
        if needs_mask:
            lane = jax.lax.broadcasted_iota(jnp.int32, x.shape, 2)
            valid = (hw * tHW + lane) < HW
            x = jnp.where(valid, x, 0.0)
        acc_ref[...] += jnp.sum(x, axis=2)  # (TN, C) partial sums (lane-axis reduce)

        @pl.when(hw == pl.num_programs(1) - 1)
        def _finalize():
            avg = acc_ref[...] * inv_hw                        # AdaptiveAvgPool2d(1)
            h = jnp.dot(avg, w1t_ref[...],
                        preferred_element_type=jnp.float32)    # (TN, hidden)
            h = jnp.maximum(h, 0.0)                            # ReLU
            out = jnp.dot(h, w2t_ref[...],
                          preferred_element_type=jnp.float32)  # (TN, C)
            o_ref[...] = jax.nn.sigmoid(out).astype(o_ref.dtype)

    return kernel


def _choose_batch_tile(N, max_tn=8):
    """Largest divisor of N that is <= max_tn (no ragged batch blocks)."""
    for tn in range(min(N, max_tn), 0, -1):
        if N % tn == 0:
            return tn
    return 1


def _choose_hw_tile(TN, C, HW, itemsize, target_bytes=2 * 1024 * 1024):
    """Spatial tile: full extent if small, else a multiple of 128 lanes ~target_bytes."""
    if TN * C * HW * itemsize <= target_bytes or HW <= 128:
        return HW
    lanes = max(128, target_bytes // (TN * C * itemsize))
    tHW = (lanes // 128) * 128
    return min(tHW, HW)


def cbam_channel(x, w1, w2):
    """x: (N, C, H, W); w1: (hidden, C, 1, 1); w2: (C, hidden, 1, 1)."""
    N, C, H, W = x.shape
    hidden = w1.shape[0]
    HW = H * W

    x_flat = x.reshape(N, C, HW)           # contiguous view; no transpose (HBM-cheap)
    w1t = w1.reshape(hidden, C).T          # (C, hidden)
    w2t = w2.reshape(C, hidden).T          # (hidden, C)

    itemsize = jnp.dtype(x.dtype).itemsize
    TN = _choose_batch_tile(N)
    tHW = _choose_hw_tile(TN, C, HW, itemsize)
    num_n = N // TN
    num_hw = pl.cdiv(HW, tHW)

    kernel = _make_cbam_kernel(HW, tHW)

    cost = pl.CostEstimate(
        flops=N * C * HW + 2 * N * C * hidden * 2,            # reduce + two tiny matmuls
        transcendentals=N * C,                                # sigmoid
        bytes_accessed=N * C * HW * itemsize + 2 * C * hidden * 4 + N * C * itemsize,
    )

    attn = pl.pallas_call(
        kernel,
        out_shape=jax.ShapeDtypeStruct((N, C), x.dtype),
        grid_spec=pltpu.PrefetchScalarGridSpec(
            num_scalar_prefetch=0,
            grid=(num_n, num_hw),                             # reduction axis last
            in_specs=[
                pl.BlockSpec((TN, C, tHW), lambda n, hw: (n, 0, hw)),
                pl.BlockSpec((C, hidden), lambda n, hw: (0, 0)),   # VMEM-resident
                pl.BlockSpec((hidden, C), lambda n, hw: (0, 0)),   # VMEM-resident
            ],
            out_specs=pl.BlockSpec((TN, C), lambda n, hw: (n, 0)),
            scratch_shapes=[pltpu.VMEM((TN, C), jnp.float32)],
        ),
        compiler_params=pltpu.CompilerParams(
            dimension_semantics=("parallel", "arbitrary")),
        cost_estimate=cost,
    )(x_flat, w1t, w2t)

    return attn.reshape(N, C, 1, 1)


def cbam_channel_ref(x, w1, w2):
    """Plain-JAX reference mirroring the PyTorch forward."""
    N, C, H, W = x.shape
    hidden = w1.shape[0]
    avg = jnp.mean(x, axis=(2, 3))                          # (N, C)
    h = jnp.maximum(avg @ w1.reshape(hidden, C).T, 0.0)     # (N, hidden)
    out = h @ w2.reshape(C, hidden).T                       # (N, C)
    return jax.nn.sigmoid(out).reshape(N, C, 1, 1)


if __name__ == "__main__":
    key = jax.random.PRNGKey(0)
    k_x, k_w1, k_w2 = jax.random.split(key, 3)

    N, C, H, W = 2, 32, 16, 16
    ratio = 16
    hidden = C // ratio  # = 2

    x = jax.random.normal(k_x, (N, C, H, W), dtype=jnp.float32)
    # deterministic synthetic weights: Conv2d(C, hidden, 1, bias=False), Conv2d(hidden, C, 1, bias=False)
    w1 = jax.random.normal(k_w1, (hidden, C, 1, 1), dtype=jnp.float32) * 0.1
    w2 = jax.random.normal(k_w2, (C, hidden, 1, 1), dtype=jnp.float32) * 0.1

    out = jax.block_until_ready(cbam_channel(x, w1, w2))
    ref = cbam_channel_ref(x, w1, w2)

    assert out.shape == (N, C, 1, 1)
    assert jnp.allclose(out, ref, atol=1e-5, rtol=1e-5)
    print("KERNEL_OK")
</pallas_src>

<mosaic_0001>
module attributes {stable_mosaic.version = 11 : i64} {
  func.func @kernel(%arg0: i32, %arg1: i32, %arg2: memref<2x32x256xf32, #tpu.memory_space<vmem>>, %arg3: memref<32x2xf32, #tpu.memory_space<vmem>>, %arg4: memref<2x32xf32, #tpu.memory_space<vmem>>, %arg5: memref<2x32xf32, #tpu.memory_space<vmem>>, %arg6: memref<2x32xf32, #tpu.memory_space<vmem>>) attributes {dimension_semantics = [#tpu.dimension_semantics<parallel>, #tpu.dimension_semantics<arbitrary>], iteration_bounds = array<i64: 1, 1>, scalar_prefetch = 0 : i64, scratch_operands = 1 : i64, tpu.core_type = #tpu.core_type<tc>, window_params = [{transform_indices = @transform_0, window_bounds = array<i64: 2, 32, 256>}, {pipeline_mode = #tpu.pipeline_mode<synchronous>, transform_indices = @transform_1, window_bounds = array<i64: 32, 2>}, {pipeline_mode = #tpu.pipeline_mode<synchronous>, transform_indices = @transform_2, window_bounds = array<i64: 2, 32>}, {transform_indices = @transform_3, window_bounds = array<i64: 2, 32>}]} {
    %c0_i32 = arith.constant 0 : i32
    %0 = arith.cmpi eq, %arg1, %c0_i32 : i32
    %1 = arith.extui %0 : i1 to i32
    %c0_i32_0 = arith.constant 0 : i32
    %2 = arith.cmpi ne, %1, %c0_i32_0 : i32
    scf.if %2 {
      %cst_9 = arith.constant 0.000000e+00 : f32
      %11 = vector.broadcast %cst_9 : f32 to vector<2x32xf32>
      %c0_10 = arith.constant 0 : index
      %c0_11 = arith.constant 0 : index
      %12 = vector.load %arg6[%c0_10, %c0_11] : memref<2x32xf32, #tpu.memory_space<vmem>>, vector<2x32xf32>
      tpu.vector_store %arg6[%c0_10, %c0_11], %11 {strides = array<i32>} : memref<2x32xf32, #tpu.memory_space<vmem>>, vector<2x32xf32>,
    } else {
    }
    %c0 = arith.constant 0 : index
    %c0_1 = arith.constant 0 : index
    %c0_2 = arith.constant 0 : index
    %3 = vector.load %arg2[%c0, %c0_1, %c0_2] : memref<2x32x256xf32, #tpu.memory_space<vmem>>, vector<2x32x256xf32>
    %c0_3 = arith.constant 0 : index
    %c0_4 = arith.constant 0 : index
    %4 = vector.load %arg6[%c0_3, %c0_4] : memref<2x32xf32, #tpu.memory_space<vmem>>, vector<2x32xf32>
    %cst = arith.constant dense<0.000000e+00> : vector<2x32xf32>
    %5 = vector.multi_reduction <add>, %3, %cst [2] : vector<2x32x256xf32> to vector<2x32xf32>
    %6 = arith.addf %4, %5 : vector<2x32xf32>
    %c0_5 = arith.constant 0 : index
    %c0_6 = arith.constant 0 : index
    %7 = vector.load %arg6[%c0_5, %c0_6] : memref<2x32xf32, #tpu.memory_space<vmem>>, vector<2x32xf32>
    tpu.vector_store %arg6[%c0_5, %c0_6], %6 {strides = array<i32>} : memref<2x32xf32, #tpu.memory_space<vmem>>, vector<2x32xf32>,
    %c0_i32_7 = arith.constant 0 : i32
    %8 = arith.cmpi eq, %arg1, %c0_i32_7 : i32
    %9 = arith.extui %8 : i1 to i32
    %c0_i32_8 = arith.constant 0 : i32
    %10 = arith.cmpi ne, %9, %c0_i32_8 : i32
    scf.if %10 {
      %c0_9 = arith.constant 0 : index
      %c0_10 = arith.constant 0 : index
      %11 = vector.load %arg6[%c0_9, %c0_10] : memref<2x32xf32, #tpu.memory_space<vmem>>, vector<2x32xf32>
      %cst_11 = arith.constant 3.906250e-03 : f32
      %12 = vector.broadcast %cst_11 : f32 to vector<2x32xf32>
      %13 = arith.mulf %11, %12 : vector<2x32xf32>
      %c0_12 = arith.constant 0 : index
      %c0_13 = arith.constant 0 : index
      %14 = vector.load %arg3[%c0_12, %c0_13] : memref<32x2xf32, #tpu.memory_space<vmem>>, vector<32x2xf32>
      %cst_14 = arith.constant dense<0.000000e+00> : vector<2x2xf32>
      %15 = tpu.matmul %13, %14, %cst_14 {dimension_numbers = #tpu.dot_dimension_numbers<[1], [0], [0], [1], [0, 0, 1, 1], [], []>} : vector<2x32xf32>, vector<32x2xf32>, vector<2x2xf32> -> vector<2x2xf32>
      %cst_15 = arith.constant 0.000000e+00 : f32
      %16 = vector.broadcast %cst_15 : f32 to vector<2x2xf32>
      %17 = arith.maximumf %15, %16 : vector<2x2xf32>
      %c0_16 = arith.constant 0 : index
      %c0_17 = arith.constant 0 : index
      %18 = vector.load %arg4[%c0_16, %c0_17] : memref<2x32xf32, #tpu.memory_space<vmem>>, vector<2x32xf32>
      %cst_18 = arith.constant dense<0.000000e+00> : vector<2x32xf32>
      %19 = tpu.matmul %17, %18, %cst_18 {dimension_numbers = #tpu.dot_dimension_numbers<[1], [0], [0], [1], [0, 0, 1, 1], [], []>} : vector<2x2xf32>, vector<2x32xf32>, vector<2x32xf32> -> vector<2x32xf32>
      %20 = arith.negf %19 : vector<2x32xf32>
      %21 = math.exp %20 : vector<2x32xf32>
      %cst_19 = arith.constant 1.000000e+00 : f32
      %22 = vector.broadcast %cst_19 : f32 to vector<2x32xf32>
      %23 = arith.addf %22, %21 : vector<2x32xf32>
      %24 = arith.divf %22, %23 : vector<2x32xf32>
      %c0_20 = arith.constant 0 : index
      %c0_21 = arith.constant 0 : index
      %25 = vector.load %arg5[%c0_20, %c0_21] : memref<2x32xf32, #tpu.memory_space<vmem>>, vector<2x32xf32>
      tpu.vector_store %arg5[%c0_20, %c0_21], %24 {strides = array<i32>} : memref<2x32xf32, #tpu.memory_space<vmem>>, vector<2x32xf32>,
    } else {
    }
    return
  }
  func.func @transform_0(%arg0: i32, %arg1: i32) -> (i32, i32, i32) {
    %c0_i32 = arith.constant 0 : i32
    %c0_i32_0 = arith.constant 0 : i32
    return %arg0, %c0_i32, %arg1 : i32, i32, i32
  }
  func.func @transform_1(%arg0: i32, %arg1: i32) -> (i32, i32) {
    %c0_i32 = arith.constant 0 : i32
    %c0_i32_0 = arith.constant 0 : i32
    %c0_i32_1 = arith.constant 0 : i32
    return %c0_i32, %c0_i32_0 : i32, i32
  }
  func.func @transform_2(%arg0: i32, %arg1: i32) -> (i32, i32) {
    %c0_i32 = arith.constant 0 : i32
    %c0_i32_0 = arith.constant 0 : i32
    %c0_i32_1 = arith.constant 0 : i32
    return %c0_i32, %c0_i32_0 : i32, i32
  }
  func.func @transform_3(%arg0: i32, %arg1: i32) -> (i32, i32) {
    %c0_i32 = arith.constant 0 : i32
    %c0_i32_0 = arith.constant 0 : i32
    return %arg0, %c0_i32 : i32, i32
  }
}

</mosaic_0001>

<llo_original>
// kernel: tpu_custom_call.1
$region0: #{tpu_custom_call.1}
  #allocation0 [shape = 'u32[]', space=smem, size = 0x4, offset = 0x4, fixed_abs, tag = 'smem constant byte address 0x4 - core index']
  #allocation1 [shape = 'u32[144,128]{1,0:T(1,128)}', space=vmem, size = 0x12000, scoped, tag = 'internal scratch']
  #allocation2 [shape = 'f32[2,32]{1,0:T(2,128)}', space=vmem, size = 0x400, scoped, tag = 'scratch operand']
  %s0 = inlined_call_operand.hbm [shape: f32[2,32,256], index: 0, kind: input, shape index: {}]
  %s1 = inlined_call_operand.vmem [shape: f32[32,2], index: 1, kind: input, shape index: {}]
  %s2 = inlined_call_operand.vmem [shape: f32[2,32], index: 2, kind: input, shape index: {}]
  %s3 = inlined_call_operand.hbm [shape: f32[2,32], index: 3, kind: output, shape index: {}]
  %s4 = sld [smem:[#allocation0]]
  $region34: #{tpu_custom_call.1} parent=0
    _
  %s6 = ssub.s32 1, %s4
  %s7 = scalar_select 0, %s6, %s4
  $region1: #{tpu_custom_call.1} parent=0
    #allocation3 [shape = 'u8[65536]{0}', space=vmem, size = 0x10000, scoped, tag = 'input window, operand 0, single buffered']
    #allocation4 [shape = 's32[1]{0}', space=sflag, size = 0x4, scoped, tag = 'scoped memory for tpu_custom_call.1']
    #allocation5 [shape = 's32[1]{0}', space=sflag, size = 0x4, scoped, tag = 'scoped memory for tpu_custom_call.1']
    #allocation6 [shape = 'u8[1024]{0}', space=vmem, size = 0x400, scoped, tag = 'output window, operand 0, single buffered']
    %8 = vsyncpa [#allocation4], 0
    %9 = vsyncpa [#allocation5], 0
    // Predicated region
    $region2: #{tpu_custom_call.1} parent=1 // pred_check
      _
    $region3: #{tpu_custom_call.1} parent=1 // pred_check_branch
      %11 = sbr.rel (0) target = $region5
    $region4: #{tpu_custom_call.1} parent=1 // pred_region
      %s13 = ssub.s32 2048, 2048
      %14 = vsyncadd [#allocation4], %s13
      %s15 = sshll.u32 [#allocation3], 4
      %s16 = int_to_ptr.vmem [resolvable:$true] %s15
      %21 = dma.hbm_to_vmem [thread:$0]  %s0, 2048, %s16, [#allocation4], 256, 256, 16
    $region5: #{tpu_custom_call.1} parent=1 // pred_fallthru
      _
    // Predicated region
    $region6: #{tpu_custom_call.1} parent=1 // pred_check
      _
    $region7: #{tpu_custom_call.1} parent=1 // pred_check_branch
      %23 = sbr.rel (0) target = $region9
    $region8: #{tpu_custom_call.1} parent=1 // pred_region
      _
    $region9: #{tpu_custom_call.1} parent=1 // pred_fallthru
      _
    // Predicated region
    $region10: #{tpu_custom_call.1} parent=1 // pred_check
      _
    $region11: #{tpu_custom_call.1} parent=1 // pred_check_branch
      %25 = sbr.rel (0) target = $region13
    $region12: #{tpu_custom_call.1} parent=1 // pred_region
      _
    $region13: #{tpu_custom_call.1} parent=1 // pred_fallthru
      _
    // Predicated region
    $region14: #{tpu_custom_call.1} parent=1 // pred_check
      _
    $region15: #{tpu_custom_call.1} parent=1 // pred_check_branch
      %27 = sbr.rel (0) target = $region17
    $region16: #{tpu_custom_call.1} parent=1 // pred_region
      %28 = dma.done [#allocation4], 2048
    $region17: #{tpu_custom_call.1} parent=1 // pred_fallthru
      _
    %p29 = scmp.eq.s32.totalorder 0, 0
    // Predicated region
    $region18: #{tpu_custom_call.1} parent=1 // pred_check
      %p30 = pneg %p29
    $region19: #{tpu_custom_call.1} parent=1 // pred_check_branch
      %32 = sbr.rel (%p30) target = $region21
    $region20: #{tpu_custom_call.1} parent=1 // pred_region
      %vm33 = vcmask 254976
      %34 = vst.msk [vmem:[#allocation2] sm:$0x3] %vm33, 0.0
    $region21: #{tpu_custom_call.1} parent=1 // pred_fallthru
      _
    %v35 = vld [vmem:[#allocation3] sm:$0xff]
    %v36 = vld [vmem:[#allocation3 + $0x8] sm:$0xff]
    %v37 = vld [vmem:[#allocation3 + $0x10] sm:$0xff]
    %v38 = vld [vmem:[#allocation3 + $0x18] sm:$0xff]
    %v39 = vld [vmem:[#allocation3 + $0x20] sm:$0xff]
    %v40 = vld [vmem:[#allocation3 + $0x28] sm:$0xff]
    %v41 = vld [vmem:[#allocation3 + $0x30] sm:$0xff]
    %v42 = vld [vmem:[#allocation3 + $0x38] sm:$0xff]
    %v43 = vld [vmem:[#allocation3 + $0x40] sm:$0xff]
    %v44 = vld [vmem:[#allocation3 + $0x48] sm:$0xff]
    %v45 = vld [vmem:[#allocation3 + $0x50] sm:$0xff]
    %v46 = vld [vmem:[#allocation3 + $0x58] sm:$0xff]
    %v47 = vld [vmem:[#allocation3 + $0x60] sm:$0xff]
    %v48 = vld [vmem:[#allocation3 + $0x68] sm:$0xff]
    %v49 = vld [vmem:[#allocation3 + $0x70] sm:$0xff]
    %v50 = vld [vmem:[#allocation3 + $0x78] sm:$0xff]
    %v51 = vld [vmem:[#allocation2] sm:$0x3]
    %v52 = vadd.f32 %v35, %v36
    %53 = vadd.xlane.f32.xlu0 %v52
    %v54 = vpop.xlane.xlu0 %53
    %v55 = vadd.f32 %v37, %v38
    %56 = vadd.xlane.f32.xlu0 %v55
    %v57 = vpop.xlane.xlu0 %56
    %v58 = vadd.f32 %v39, %v40
    %59 = vadd.xlane.f32.xlu0 %v58
    %v60 = vpop.xlane.xlu0 %59
    %v61 = vadd.f32 %v41, %v42
    %62 = vadd.xlane.f32.xlu0 %v61
    %v63 = vpop.xlane.xlu0 %62
    %v64 = vadd.f32 %v43, %v44
    %65 = vadd.xlane.f32.xlu0 %v64
    %v66 = vpop.xlane.xlu0 %65
    %v67 = vadd.f32 %v45, %v46
    %68 = vadd.xlane.f32.xlu0 %v67
    %v69 = vpop.xlane.xlu0 %68
    %v70 = vadd.f32 %v47, %v48
    %71 = vadd.xlane.f32.xlu0 %v70
    %v72 = vpop.xlane.xlu0 %71
    %v73 = vadd.f32 %v49, %v50
    %74 = vadd.xlane.f32.xlu0 %v73
    %v75 = vpop.xlane.xlu0 %74
    %v84 = vlaneseq
    %v85 = vand.u32 %v84, 127
    %v86 = vlaneseq
    %v87 = vshrl.u32 %v86, 7
    %v88 = vsub.s32 %v85, %v87
    %v89 = vrot.slane %v54, %v88
    %v90 = vadd.s32 %v85, 4294967288
    %v91 = vlaneseq
    %v92 = vshrl.u32 %v91, 7
    %v93 = vsub.s32 %v90, %v92
    %v94 = vrot.slane %v57, %v93
    %vm95 = vcmask 130112
    %v96 = vsel %vm95, %v94, %v89
    %v97 = vadd.s32 %v85, 4294967280
    %v98 = vlaneseq
    %v99 = vshrl.u32 %v98, 7
    %v100 = vsub.s32 %v97, %v99
    %v101 = vrot.slane %v60, %v100
    %vm102 = vcmask 195712
    %v103 = vsel %vm102, %v101, %v96
    %v104 = vadd.s32 %v85, 4294967272
    %v105 = vlaneseq
    %v106 = vshrl.u32 %v105, 7
    %v107 = vsub.s32 %v104, %v106
    %v108 = vrot.slane %v63, %v107
    %vm109 = vcmask 261312
    %v110 = vsel %vm109, %v108, %v103
    %v111 = vlaneseq
    %v112 = vshrl.u32 %v111, 7
    %v113 = vsub.s32 %v85, %v112
    %v114 = vrot.slane %v66, %v113
    %v115 = vlaneseq
    %v116 = vshrl.u32 %v115, 7
    %v117 = vsub.s32 %v90, %v116
    %v118 = vrot.slane %v69, %v117
    %v119 = vsel %vm95, %v118, %v114
    %v120 = vlaneseq
    %v121 = vshrl.u32 %v120, 7
    %v122 = vsub.s32 %v97, %v121
    %v123 = vrot.slane %v72, %v122
    %v124 = vsel %vm102, %v123, %v119
    %v125 = vlaneseq
    %v126 = vshrl.u32 %v125, 7
    %v127 = vsub.s32 %v104, %v126
    %v128 = vrot.slane %v75, %v127
    %v129 = vsel %vm109, %v128, %v124
    %vm130 = vcmask 1041409
    %v131 = vsel %vm130, %v129, %v110
    %v133 = vadd.f32 %v51, %v131
    %vm134 = vcmask 254976
    %135 = vst.msk [vmem:[#allocation2] sm:$0x3] %vm134, %v133
    // Predicated region
    $region22: #{tpu_custom_call.1} parent=1 // pred_check
      %p136 = pneg %p29
    $region23: #{tpu_custom_call.1} parent=1 // pred_check_branch
      %138 = sbr.rel (%p136) target = $region25
    $region24: #{tpu_custom_call.1} parent=1 // pred_region
      %v139 = vld [vmem:[#allocation2] sm:$0x3]
      %v140 = vmul.f32 %v139, 0.00390625
      %v141 = vld [vmem:[%s1] sm:$0xff]
      %v142 = vld [vmem:[%s1 + $0x8] sm:$0xff]
      %v143 = vld [vmem:[%s1 + $0x10] sm:$0xff]
      %v144 = vld [vmem:[%s1 + $0x18] sm:$0xff]
      %vm145 = vcmask 261120
      %v147 = vsel %vm145, %v140, 0
      %149 = vmatprep.subr.mxu0 0.0
      %150 = vmatpush1.msra.mxu0 %v141
      %151 = vmatprep.subr.mxu0 0.0
      %152 = vmatpush1.msra.mxu0 %v142
      %153 = vmatprep.subr.mxu0 0.0
      %154 = vmatpush1.msra.mxu0 %v143
      %155 = vmatprep.subr.mxu0 0.0
      %156 = vmatpush1.msra.mxu0 %v144
      %157 = vmatprep.subr.mxu0 0.0
      %158 = vmatpush1.msra.mxu0 0.0
      %159 = vmatprep.subr.mxu0 0.0
      %160 = vmatpush1.msra.mxu0 0.0
      %161 = vmatprep.subr.mxu0 0.0
      %162 = vmatpush1.msra.mxu0 0.0
      %163 = vmatprep.subr.mxu0 0.0
      %164 = vmatpush1.msra.mxu0 0.0
      %165 = vmatprep.subr.mxu0 0.0
      %166 = vmatpush1.msra.mxu0 0.0
      %167 = vmatprep.subr.mxu0 0.0
      %168 = vmatpush1.msra.mxu0 0.0
      %169 = vmatprep.subr.mxu0 0.0
      %170 = vmatpush1.msra.mxu0 0.0
      %171 = vmatprep.subr.mxu0 0.0
      %172 = vmatpush1.msra.mxu0 0.0
      %173 = vmatprep.subr.mxu0 0.0
      %174 = vmatpush1.msra.mxu0 0.0
      %175 = vmatprep.subr.mxu0 0.0
      %176 = vmatpush1.msra.mxu0 0.0
      %177 = vmatprep.subr.mxu0 0.0
      %178 = vmatpush1.msra.mxu0 0.0
      %179 = vmatprep.subr.mxu0 0.0
      %180 = vmatpush1.msra.mxu0 0.0
      %181 = vmatprep.subr.mxu0 0.0
      %182 = vmatpush1.msra.mxu0 0.0
      %183 = vmatprep.subr.mxu0 0.0
      %184 = vmatpush1.msra.mxu0 0.0
      %185 = vmatprep.subr.mxu0 0.0
      %186 = vmatpush1.msra.mxu0 0.0
      %187 = vmatprep.subr.mxu0 0.0
      %188 = vmatpush1.msra.mxu0 0.0
      %189 = vmatprep.subr.mxu0 0.0
      %190 = vmatpush1.msra.mxu0 0.0
      %191 = vmatprep.subr.mxu0 0.0
      %192 = vmatpush1.msra.mxu0 0.0
      %193 = vmatprep.subr.mxu0 0.0
      %194 = vmatpush1.msra.mxu0 0.0
      %195 = vmatprep.subr.mxu0 0.0
      %196 = vmatpush1.msra.mxu0 0.0
      %197 = vmatprep.subr.mxu0 0.0
      %198 = vmatpush1.msra.mxu0 0.0
      %199 = vmatprep.subr.mxu0 0.0
      %200 = vmatpush1.msra.mxu0 0.0
      %201 = vmatprep.subr.mxu0 0.0
      %202 = vmatpush1.msra.mxu0 0.0
      %203 = vmatprep.subr.mxu0 0.0
      %204 = vmatpush1.msra.mxu0 0.0
      %205 = vmatprep.subr.mxu0 0.0
      %206 = vmatpush1.msra.mxu0 0.0
      %207 = vmatprep.subr.mxu0 0.0
      %208 = vmatpush1.msra.mxu0 0.0
      %209 = vmatprep.subr.mxu0 0.0
      %210 = vmatpush1.msra.mxu0 0.0
      %211 = vmatprep.subr.mxu0 0.0
      %212 = vmatpush1.msra.mxu0 0.0
      %213 = vmatprep.mubr.f32.mxu0 0.0
      %214 = vmatmul.mubr.f32.gmra.mrb[0].mxu0 %v147
      %v215 = vpop.f32.mrb[0].mxu0
      %v216 = vadd.f32 0.0, %v215
      %v217 = vpop.f32.mrb[0].mxu0
      %218 = vdwg.mxu0
      %v219 = vmax.f32 %v216, 0.0
      %v220 = vld [vmem:[%s2] sm:$0x3]
      %vm221 = vcmask 15360
      %v223 = vsel %vm221, %v219, 0
      %vm225 = vcmask 1041408
      %v227 = vsel %vm225, %v220, 0
      %229 = vmatprep.subr.mxu0 0.0
      %230 = vmatpush1.msra.mxu0 %v227
      %231 = vmatprep.subr.mxu0 0.0
      %232 = vmatpush1.msra.mxu0 0.0
      %233 = vmatprep.subr.mxu0 0.0
      %234 = vmatpush1.msra.mxu0 0.0
      %235 = vmatprep.subr.mxu0 0.0
      %236 = vmatpush1.msra.mxu0 0.0
      %237 = vmatprep.subr.mxu0 0.0
      %238 = vmatpush1.msra.mxu0 0.0
      %239 = vmatprep.subr.mxu0 0.0
      %240 = vmatpush1.msra.mxu0 0.0
      %241 = vmatprep.subr.mxu0 0.0
      %242 = vmatpush1.msra.mxu0 0.0
      %243 = vmatprep.subr.mxu0 0.0
      %244 = vmatpush1.msra.mxu0 0.0
      %245 = vmatprep.subr.mxu0 0.0
      %246 = vmatpush1.msra.mxu0 0.0
      %247 = vmatprep.subr.mxu0 0.0
      %248 = vmatpush1.msra.mxu0 0.0
      %249 = vmatprep.subr.mxu0 0.0
      %250 = vmatpush1.msra.mxu0 0.0
      %251 = vmatprep.subr.mxu0 0.0
      %252 = vmatpush1.msra.mxu0 0.0
      %253 = vmatprep.subr.mxu0 0.0
      %254 = vmatpush1.msra.mxu0 0.0
      %255 = vmatprep.subr.mxu0 0.0
      %256 = vmatpush1.msra.mxu0 0.0
      %257 = vmatprep.subr.mxu0 0.0
      %258 = vmatpush1.msra.mxu0 0.0
      %259 = vmatprep.subr.mxu0 0.0
      %260 = vmatpush1.msra.mxu0 0.0
      %261 = vmatprep.subr.mxu0 0.0
      %262 = vmatpush1.msra.mxu0 0.0
      %263 = vmatprep.subr.mxu0 0.0
      %264 = vmatpush1.msra.mxu0 0.0
      %265 = vmatprep.subr.mxu0 0.0
      %266 = vmatpush1.msra.mxu0 0.0
      %267 = vmatprep.subr.mxu0 0.0
      %268 = vmatpush1.msra.mxu0 0.0
      %269 = vmatprep.subr.mxu0 0.0
      %270 = vmatpush1.msra.mxu0 0.0
      %271 = vmatprep.subr.mxu0 0.0
      %272 = vmatpush1.msra.mxu0 0.0
      %273 = vmatprep.subr.mxu0 0.0
      %274 = vmatpush1.msra.mxu0 0.0
      %275 = vmatprep.subr.mxu0 0.0
      %276 = vmatpush1.msra.mxu0 0.0
      %277 = vmatprep.subr.mxu0 0.0
      %278 = vmatpush1.msra.mxu0 0.0
      %279 = vmatprep.subr.mxu0 0.0
      %280 = vmatpush1.msra.mxu0 0.0
      %281 = vmatprep.subr.mxu0 0.0
      %282 = vmatpush1.msra.mxu0 0.0
      %283 = vmatprep.subr.mxu0 0.0
      %284 = vmatpush1.msra.mxu0 0.0
      %285 = vmatprep.subr.mxu0 0.0
      %286 = vmatpush1.msra.mxu0 0.0
      %287 = vmatprep.subr.mxu0 0.0
      %288 = vmatpush1.msra.mxu0 0.0
      %289 = vmatprep.subr.mxu0 0.0
      %290 = vmatpush1.msra.mxu0 0.0
      %291 = vmatprep.subr.mxu0 0.0
      %292 = vmatpush1.msra.mxu0 0.0
      %293 = vmatprep.mubr.f32.mxu0 0.0
      %294 = vmatmul.mubr.f32.gmra.mrb[0].mxu0 %v223
      %v295 = vpop.f32.mrb[0].mxu0
      %v296 = vadd.f32 0.0, %v295
      %v297 = vpop.f32.mrb[0].mxu0
      %298 = vdwg.mxu0
      %v299 = vxor.u32 %v296, 2147483648
      %v300 = vmul.f32 %v299, 1.442695
      %v301 = vpow.pop %v300
      %v302 = vadd.f32 %v301, 1.0
      %v303 = vrcp.pop %v302
      %v304 = vmul.f32 1.0, %v303
      %305 = vst.msk [vmem:[#allocation6] sm:$0x3] %vm134, %v304
    $region25: #{tpu_custom_call.1} parent=1 // pred_fallthru
      _
    // Predicated region
    $region26: #{tpu_custom_call.1} parent=1 // pred_check
      _
    $region27: #{tpu_custom_call.1} parent=1 // pred_check_branch
      %307 = sbr.rel (0) target = $region29
    $region28: #{tpu_custom_call.1} parent=1 // pred_region
      %s309 = ssub.s32 32, 32
      %310 = vsyncadd [#allocation5], %s309
      %s312 = sshll.u32 [#allocation6], 4
      %s313 = int_to_ptr.vmem [resolvable:$true] %s312
      %315 = dma.vmem_to_hbm [thread:$0]  %s313, 32, %s3, [#allocation5]
    $region29: #{tpu_custom_call.1} parent=1 // pred_fallthru
      _
    // Predicated region
    $region30: #{tpu_custom_call.1} parent=1 // pred_check
      _
    $region31: #{tpu_custom_call.1} parent=1 // pred_check_branch
      %317 = sbr.rel (0) target = $region33
    $region32: #{tpu_custom_call.1} parent=1 // pred_region
      %318 = dma.done [#allocation5], 32
    $region33: #{tpu_custom_call.1} parent=1 // pred_fallthru
      _
    %319 = vsyncpa [#allocation4], 1
    %320 = vsyncpa [#allocation5], 1

</llo_original>
